<compile_context>
chip_gen: v7x
topology: tpu7x:2x2x1
jax: 0.10.0
libtpu: 0.0.40
codegen_flags: <defaults>
</compile_context>

<pallas_src>
import functools

import numpy as np
import jax
import jax.numpy as jnp
from jax.experimental import pallas as pl
from jax.experimental.pallas import tpu as pltpu

_LANES = 128


def _las_kernel(x_ref, tgt_ref, sm_ref, out_ref, *, b_total):
    # x_ref:   [TB, C] native-dtype logits
    # tgt_ref: [TB, 1] int32   class index per row
    # sm_ref:  [TB, 1] float32 smooth[target] (gathered in the wrapper)
    # out_ref: [1, 128] float32 per-tile partial sum (broadcast across lanes)
    i = pl.program_id(0)
    x = x_ref[...].astype(jnp.float32)                    # [TB, C]
    # TODO(synk): on v6e/v7x keep x in bf16 until the exp/lse accumulation to
    #             halve vreg pressure; v5e has no bf16 VALU so upcast stays.
    tgt = tgt_ref[...]                                    # [TB, 1]
    sm = sm_ref[...]                                      # [TB, 1]
    tb, c = x.shape

    # Per-row logsumexp (numerically stable); no logprobs materialized.
    m = jnp.max(x, axis=-1, keepdims=True)                # [TB, 1]
    s = m + jnp.log(jnp.sum(jnp.exp(x - m), axis=-1, keepdims=True))
    # TODO(synk): if profiling shows VALU/XLU slot saturation on v7x, push the
    #             two row-sums through the idle MXU via a dot with a ones [C,1].

    # Fused weighted reduction:
    #   (1-sm)*nll + sm*smooth_loss == s - sum(x * ((1-sm)*onehot + sm/C))
    col = jax.lax.broadcasted_iota(jnp.int32, (tb, c), 1)
    base = sm * (1.0 / c)                                 # [TB, 1]  (= sm/C)
    w = jnp.where(col == tgt, (1.0 - sm) + base, base)    # [TB, C]
    loss = s - jnp.sum(x * w, axis=-1, keepdims=True)     # [TB, 1]

    # Mask ragged rows of the last tile (their x/target data is undefined),
    # reduce to one per-tile partial sum and store it lane-dense.
    row = jax.lax.broadcasted_iota(jnp.int32, (tb, 1), 0) + i * tb
    loss = jnp.where(row < b_total, loss, 0.0)
    part = jnp.sum(loss, axis=0, keepdims=True)           # [1, 1]
    out_ref[...] = jnp.broadcast_to(part, (1, _LANES)).astype(jnp.float32)


def _vmem_budget():
    """Generation-aware scoped-VMEM limit and per-x-buffer byte budget."""
    cap = 0
    try:
        cap = int(getattr(pltpu.get_tpu_info(), "vmem_capacity_bytes", 0) or 0)
    except Exception:
        cap = 0
    if cap <= 0:
        cap = 64 * 1024 * 1024              # conservative fallback (v7x physical)
    # 32 MiB scoped limit on 64-MiB v7x, 64 MiB on 128-MiB v5e/v6e.
    vmem_limit = min(cap // 2, 64 * 1024 * 1024)
    # ~40% of the limit per x buffer (double-buffered) leaves headroom for the
    # (TB,1) side inputs, the tiny output and internal scratch.
    per_buffer = (vmem_limit * 2) // 5
    return vmem_limit, per_buffer


def _pick_row_tile(B, C, itemsize, per_buffer_bytes):
    """Largest row tile whose double-buffered x block fits the VMEM budget."""
    align = max(8, 32 // max(1, itemsize))      # 8 (f32) / 16 (bf16) / 32 (int8)
    if B <= align:
        return B                                # block == full array dim
    tb = per_buffer_bytes // max(1, C * itemsize)
    tb = int(min(tb, 2048, B))
    tb = max(align, (tb // align) * align)      # sublane-packing aligned
    return tb


def label_aware_smoothing_loss(x, target, smooth, *, row_tile=None):
    """x: [B, C] logits in their NATIVE dtype (pass bf16 straight through - do
    NOT pre-cast to f32), target: [B] int, smooth: [C] float32.
    Returns the scalar float32 mean loss (matches LabelAwareSmoothing.forward).
    """
    B, C = x.shape
    tgt2d = target.astype(jnp.int32).reshape(B, 1)
    # Gather smooth[target] in the wrapper (trivial [B] gather) so the kernel
    # never needs the (1, C) smoothing vector or an in-kernel gather pass.
    sm2d = smooth.astype(jnp.float32)[target].reshape(B, 1)

    itemsize = x.dtype.itemsize
    vmem_limit, per_buffer = _vmem_budget()
    tb = row_tile if row_tile is not None else _pick_row_tile(B, C, itemsize, per_buffer)
    num_tiles = pl.cdiv(B, tb)

    cost = pl.CostEstimate(
        flops=6 * B * C,
        transcendentals=B * C + B,               # exp per element + log per row
        bytes_accessed=B * C * itemsize + 2 * B * 4 + num_tiles * _LANES * 4,
    )

    kernel = functools.partial(_las_kernel, b_total=B)

    parts = pl.pallas_call(
        kernel,
        out_shape=jax.ShapeDtypeStruct((1, num_tiles * _LANES), jnp.float32),
        grid_spec=pl.GridSpec(
            grid=(num_tiles,),
            in_specs=[
                pl.BlockSpec((tb, C), lambda i: (i, 0)),   # streamed logits
                pl.BlockSpec((tb, 1), lambda i: (i, 0)),   # streamed targets
                pl.BlockSpec((tb, 1), lambda i: (i, 0)),   # streamed smooth[target]
            ],
            out_specs=pl.BlockSpec((1, _LANES), lambda i: (0, i)),
        ),
        compiler_params=pltpu.CompilerParams(
            dimension_semantics=("parallel",),   # independent row tiles
            vmem_limit_bytes=vmem_limit,
        ),
        cost_estimate=cost,
    )(x, tgt2d, sm2d)

    # One partial sum per tile (replicated across the 128 lanes of its block).
    per_tile = parts.reshape(num_tiles, _LANES)[:, 0]
    return jnp.sum(per_tile) / jnp.float32(B)


def make_smooth(cls_num_list, smooth_head, smooth_tail, shape="concave", power=None):
    """Deterministic re-implementation of LabelAwareSmoothing.__init__ (host-side)."""
    cls = np.asarray(cls_num_list, dtype=np.float64)
    n_1 = cls.max()
    n_K = cls.min()
    if shape == "concave":
        smooth = smooth_tail + (smooth_head - smooth_tail) * np.sin(
            (cls - n_K) * np.pi / (2 * (n_1 - n_K)))
    elif shape == "linear":
        smooth = smooth_tail + (smooth_head - smooth_tail) * (cls - n_K) / (n_1 - n_K)
    elif shape == "convex":
        smooth = smooth_head + (smooth_head - smooth_tail) * np.sin(
            1.5 * np.pi + (cls - n_K) * np.pi / (2 * (n_1 - n_K)))
    elif shape == "exp" and power is not None:
        smooth = smooth_tail + (smooth_head - smooth_tail) * np.power(
            (cls - n_K) / (n_1 - n_K), power)
    else:
        raise ValueError("bad shape/power")
    return jnp.asarray(smooth, dtype=jnp.float32)


def _reference_loss(x, target, smooth):
    logprobs = jax.nn.log_softmax(x.astype(jnp.float32), axis=-1)
    nll = -jnp.take_along_axis(logprobs, target[:, None], axis=-1)[:, 0]
    sm_loss = -jnp.mean(logprobs, axis=-1)
    sm = smooth[target]
    return jnp.mean((1.0 - sm) * nll + sm * sm_loss)


if __name__ == "__main__":
    key = jax.random.PRNGKey(0)

    # --- Small demo (module-sized): B=8 rows, C=16 classes, f32 logits ---
    B, C = 8, 16
    cls_num_list = [1000 - 60 * i for i in range(C)]     # head -> tail imbalance
    smooth = make_smooth(cls_num_list, smooth_head=0.4, smooth_tail=0.1, shape="concave")

    kx, kt, kx2, kt2 = jax.random.split(key, 4)
    x = jax.random.normal(kx, (B, C), dtype=jnp.float32)
    target = jax.random.randint(kt, (B,), 0, C, dtype=jnp.int32)

    loss = label_aware_smoothing_loss(x, target, smooth)
    jax.block_until_ready(loss)
    ref = _reference_loss(x, target, smooth)
    assert jnp.allclose(loss, ref, atol=1e-4, rtol=1e-4), (loss, ref)

    # --- Larger check exercising the multi-step B-tiled grid + ragged tile ---
    B2, C2 = 250, 384                                    # 250 -> ragged last tile
    cls2 = [5000 - 12 * i for i in range(C2)]
    smooth2 = make_smooth(cls2, smooth_head=0.4, smooth_tail=0.05, shape="linear")
    x2 = jax.random.normal(kx2, (B2, C2), dtype=jnp.float32)
    t2 = jax.random.randint(kt2, (B2,), 0, C2, dtype=jnp.int32)

    loss2 = label_aware_smoothing_loss(x2, t2, smooth2, row_tile=64)   # grid=(4,)
    jax.block_until_ready(loss2)
    ref2 = _reference_loss(x2, t2, smooth2)
    assert jnp.allclose(loss2, ref2, atol=1e-4, rtol=1e-4), (loss2, ref2)

    # --- bf16 logits straight through the BlockSpec (half HBM traffic) ---
    x2_bf16 = x2.astype(jnp.bfloat16)
    loss3 = label_aware_smoothing_loss(x2_bf16, t2, smooth2, row_tile=64)
    jax.block_until_ready(loss3)
    ref3 = _reference_loss(x2_bf16, t2, smooth2)     # reference on same rounded logits
    assert jnp.allclose(loss3, ref3, atol=1e-4, rtol=1e-4), (loss3, ref3)

    print("KERNEL_OK")
</pallas_src>

<mosaic_0001>
module attributes {stable_mosaic.version = 11 : i64} {
  func.func @_las_kernel(%arg0: i32, %arg1: memref<8x16xf32, #tpu.memory_space<vmem>>, %arg2: memref<8x1xi32, #tpu.memory_space<vmem>>, %arg3: memref<8x1xf32, #tpu.memory_space<vmem>>, %arg4: memref<1x128xf32, #tpu.memory_space<vmem>>) attributes {dimension_semantics = [#tpu.dimension_semantics<parallel>], iteration_bounds = array<i64: 1>, scalar_prefetch = 0 : i64, scratch_operands = 0 : i64, tpu.core_type = #tpu.core_type<tc>, window_params = [{transform_indices = @transform_0, window_bounds = array<i64: 8, 16>}, {transform_indices = @transform_1, window_bounds = array<i64: 8, 1>}, {transform_indices = @transform_2, window_bounds = array<i64: 8, 1>}, {transform_indices = @transform_3, window_bounds = array<i64: 1, 128>}]} {
    %c0 = arith.constant 0 : index
    %c0_0 = arith.constant 0 : index
    %0 = vector.load %arg1[%c0, %c0_0] : memref<8x16xf32, #tpu.memory_space<vmem>>, vector<8x16xf32>
    %c0_1 = arith.constant 0 : index
    %c0_2 = arith.constant 0 : index
    %1 = vector.load %arg2[%c0_1, %c0_2] : memref<8x1xi32, #tpu.memory_space<vmem>>, vector<8x1xi32>
    %c0_3 = arith.constant 0 : index
    %c0_4 = arith.constant 0 : index
    %2 = vector.load %arg3[%c0_3, %c0_4] : memref<8x1xf32, #tpu.memory_space<vmem>>, vector<8x1xf32>
    %cst = arith.constant dense<0xFF800000> : vector<8xf32>
    %3 = vector.multi_reduction <maximumf>, %0, %cst [1] : vector<8x16xf32> to vector<8xf32>
    %4 = vector.shape_cast %3 : vector<8xf32> to vector<8x1xf32>
    %5 = vector.broadcast %4 : vector<8x1xf32> to vector<8x16xf32>
    %6 = arith.subf %0, %5 : vector<8x16xf32>
    %7 = math.exp %6 : vector<8x16xf32>
    %cst_5 = arith.constant dense<0.000000e+00> : vector<8xf32>
    %8 = vector.multi_reduction <add>, %7, %cst_5 [1] : vector<8x16xf32> to vector<8xf32>
    %9 = vector.shape_cast %8 : vector<8xf32> to vector<8x1xf32>
    %10 = math.log %9 : vector<8x1xf32>
    %11 = arith.addf %4, %10 : vector<8x1xf32>
    %12 = tpu.iota {dimensions = array<i32: 1>} : vector<8x16xi32>
    %cst_6 = arith.constant 6.250000e-02 : f32
    %13 = vector.broadcast %cst_6 : f32 to vector<8x1xf32>
    %14 = arith.mulf %2, %13 : vector<8x1xf32>
    %15 = vector.broadcast %1 : vector<8x1xi32> to vector<8x16xi32>
    %16 = arith.cmpi eq, %12, %15 : vector<8x16xi32>
    %cst_7 = arith.constant 1.000000e+00 : f32
    %17 = vector.broadcast %cst_7 : f32 to vector<8x1xf32>
    %18 = arith.subf %17, %2 : vector<8x1xf32>
    %19 = arith.addf %18, %14 : vector<8x1xf32>
    %20 = vector.shape_cast %19 : vector<8x1xf32> to vector<8x1xf32>
    %21 = vector.broadcast %20 : vector<8x1xf32> to vector<8x16xf32>
    %22 = vector.shape_cast %14 : vector<8x1xf32> to vector<8x1xf32>
    %23 = vector.broadcast %22 : vector<8x1xf32> to vector<8x16xf32>
    %24 = arith.select %16, %21, %23 : vector<8x16xi1>, vector<8x16xf32>
    %25 = arith.mulf %0, %24 : vector<8x16xf32>
    %cst_8 = arith.constant dense<0.000000e+00> : vector<8xf32>
    %26 = vector.multi_reduction <add>, %25, %cst_8 [1] : vector<8x16xf32> to vector<8xf32>
    %27 = vector.shape_cast %26 : vector<8xf32> to vector<8x1xf32>
    %28 = arith.subf %11, %27 : vector<8x1xf32>
    %29 = tpu.iota {dimensions = array<i32: 0>} : vector<8x1xi32>
    %c8_i32 = arith.constant 8 : i32
    %30 = arith.muli %arg0, %c8_i32 : i32
    %31 = vector.broadcast %30 : i32 to vector<8x1xi32>
    %32 = arith.addi %29, %31 : vector<8x1xi32>
    %c8_i32_9 = arith.constant 8 : i32
    %33 = vector.broadcast %c8_i32_9 : i32 to vector<8x1xi32>
    %34 = arith.cmpi slt, %32, %33 : vector<8x1xi32>
    %cst_10 = arith.constant 0.000000e+00 : f32
    %35 = vector.broadcast %cst_10 : f32 to vector<8x1xf32>
    %36 = arith.select %34, %28, %35 : vector<8x1xi1>, vector<8x1xf32>
    %cst_11 = arith.constant dense<0.000000e+00> : vector<1xf32>
    %37 = vector.multi_reduction <add>, %36, %cst_11 [0] : vector<8x1xf32> to vector<1xf32>
    %38 = vector.shape_cast %37 : vector<1xf32> to vector<1x1xf32>
    %39 = vector.shape_cast %38 : vector<1x1xf32> to vector<1x1xf32>
    %40 = vector.broadcast %39 : vector<1x1xf32> to vector<1x128xf32>
    %c0_12 = arith.constant 0 : index
    %c0_13 = arith.constant 0 : index
    %41 = vector.load %arg4[%c0_12, %c0_13] : memref<1x128xf32, #tpu.memory_space<vmem>>, vector<1x128xf32>
    tpu.vector_store %arg4[%c0_12, %c0_13], %40 {strides = array<i32>} : memref<1x128xf32, #tpu.memory_space<vmem>>, vector<1x128xf32>,
    return
  }
  func.func @transform_0(%arg0: i32) -> (i32, i32) {
    %c0_i32 = arith.constant 0 : i32
    %c0_i32_0 = arith.constant 0 : i32
    return %arg0, %c0_i32 : i32, i32
  }
  func.func @transform_1(%arg0: i32) -> (i32, i32) {
    %c0_i32 = arith.constant 0 : i32
    %c0_i32_0 = arith.constant 0 : i32
    return %arg0, %c0_i32 : i32, i32
  }
  func.func @transform_2(%arg0: i32) -> (i32, i32) {
    %c0_i32 = arith.constant 0 : i32
    %c0_i32_0 = arith.constant 0 : i32
    return %arg0, %c0_i32 : i32, i32
  }
  func.func @transform_3(%arg0: i32) -> (i32, i32) {
    %c0_i32 = arith.constant 0 : i32
    %c0_i32_0 = arith.constant 0 : i32
    return %c0_i32, %arg0 : i32, i32
  }
}

</mosaic_0001>

<llo_original>
// kernel: tpu_custom_call.1
$region0: #{tpu_custom_call.1}
  #allocation0 [shape = 'u32[]', space=smem, size = 0x4, offset = 0x4, fixed_abs, tag = 'smem constant byte address 0x4 - core index']
  #allocation1 [shape = 'u32[144,128]{1,0:T(1,128)}', space=vmem, size = 0x12000, scoped, tag = 'internal scratch']
  %s0 = inlined_call_operand.vmem [shape: f32[8,16], index: 0, kind: input, shape index: {}]
  %s1 = inlined_call_operand.vmem [shape: s32[8,1], index: 1, kind: input, shape index: {}]
  %s2 = inlined_call_operand.vmem [shape: f32[8,1], index: 2, kind: input, shape index: {}]
  %s3 = inlined_call_operand.hbm [shape: f32[1,128], index: 3, kind: output, shape index: {}]
  %s4 = sld [smem:[#allocation0]]
  $region22: #{tpu_custom_call.1} parent=0
    _
  %s6 = ssub.s32 1, %s4
  %s7 = scalar_select 0, %s6, %s4
  $region1: #{tpu_custom_call.1} parent=0
    #allocation2 [shape = 'u8[512]{0}', space=vmem, size = 0x400, scoped, tag = 'output window, operand 0, single buffered']
    #allocation3 [shape = 's32[1]{0}', space=sflag, size = 0x4, scoped, tag = 'scoped memory for tpu_custom_call.1']
    %8 = vsyncpa [#allocation3], 0
    // Predicated region
    $region2: #{tpu_custom_call.1} parent=1 // pred_check
      _
    $region3: #{tpu_custom_call.1} parent=1 // pred_check_branch
      %10 = sbr.rel (0) target = $region5
    $region4: #{tpu_custom_call.1} parent=1 // pred_region
      _
    $region5: #{tpu_custom_call.1} parent=1 // pred_fallthru
      _
    // Predicated region
    $region6: #{tpu_custom_call.1} parent=1 // pred_check
      _
    $region7: #{tpu_custom_call.1} parent=1 // pred_check_branch
      %12 = sbr.rel (0) target = $region9
    $region8: #{tpu_custom_call.1} parent=1 // pred_region
      _
    $region9: #{tpu_custom_call.1} parent=1 // pred_fallthru
      _
    // Predicated region
    $region10: #{tpu_custom_call.1} parent=1 // pred_check
      _
    $region11: #{tpu_custom_call.1} parent=1 // pred_check_branch
      %14 = sbr.rel (0) target = $region13
    $region12: #{tpu_custom_call.1} parent=1 // pred_region
      _
    $region13: #{tpu_custom_call.1} parent=1 // pred_fallthru
      _
    %v15 = vld [vmem:[%s0] sm:$0xff]
    %v16 = vld [vmem:[%s1] sm:$0xff]
    %v17 = vld [vmem:[%s2] sm:$0xff]
    %vm18 = vcmask 130048
    %v19 = vsel %vm18, %v15, -inf
    %20 = vmax.xlane.f32.xlu0 %v19
    %v21 = vpop.xlane.xlu0 %20
    %v22 = vsub.f32 %v15, %v21
    %v23 = vmul.f32 %v22, 1.442695
    %v24 = vpow.pop %v23
    %v25 = vsel %vm18, %v24, 0.0
    %26 = vadd.xlane.f32.xlu0 %v25
    %v27 = vpop.xlane.xlu0 %26
    %v28 = vlog2.pop %v27
    %v29 = vmul.f32 %v28, 0.6931472
    %v30 = vadd.f32 %v21, %v29
    %v31 = vlaneseq
    %v32 = vand.u32 %v31, 127
    %v33 = vmul.f32 %v17, 0.0625
    %34 = vset.pattern.permute.xlu0 0
    %35 = vperm.xlu0 %34, %v16
    %v36 = vpop.permute.xlu0 %35
    %vm37 = vcmp.eq.s32.totalorder %v32, %v36
    %v38 = vsub.f32 1.0, %v17
    %v39 = vadd.f32 %v38, %v33
    %41 = vset.pattern.permute.xlu0 0
    %42 = vperm.xlu0 %41, %v39
    %v43 = vpop.permute.xlu0 %42
    %46 = vset.pattern.permute.xlu0 0
    %47 = vperm.xlu0 %46, %v33
    %v48 = vpop.permute.xlu0 %47
    %v50 = vsel %vm37, %v43, %v48
    %v51 = vmul.f32 %v15, %v50
    %v52 = vsel %vm18, %v51, 0.0
    %53 = vadd.xlane.f32.xlu0 %v52
    %v54 = vpop.xlane.xlu0 %53
    %v55 = vsub.f32 %v30, %v54
    %v56 = vlaneseq
    %v57 = vshrl.u32 %v56, 7
    %s58 = smul.u32 0, 8
    %v59 = vstv %s58
    %v60 = vadd.s32 %v57, %v59
    %vm61 = vcmp.lt.s32.totalorder %v60, 8
    %v62 = vsel %vm61, %v55, 0.0
    %v63 = vrot.slane %v62, 4
    %v64 = vadd.f32 %v62, %v63
    %v65 = vrot.slane %v64, 2
    %v66 = vadd.f32 %v64, %v65
    %v67 = vrot.slane %v66, 1
    %v68 = vadd.f32 %v66, %v67
    %69 = vst [vmem:[#allocation2] sm:$0x1] %v68
    // Predicated region
    $region14: #{tpu_custom_call.1} parent=1 // pred_check
      _
    $region15: #{tpu_custom_call.1} parent=1 // pred_check_branch
      %71 = sbr.rel (0) target = $region17
    $region16: #{tpu_custom_call.1} parent=1 // pred_region
      %s73 = ssub.s32 16, 16
      %74 = vsyncadd [#allocation3], %s73
      %s76 = sshll.u32 [#allocation2], 4
      %s77 = int_to_ptr.vmem [resolvable:$true] %s76
      %79 = dma.vmem_to_hbm [thread:$0]  %s77, 16, %s3, [#allocation3]
    $region17: #{tpu_custom_call.1} parent=1 // pred_fallthru
      _
    // Predicated region
    $region18: #{tpu_custom_call.1} parent=1 // pred_check
      _
    $region19: #{tpu_custom_call.1} parent=1 // pred_check_branch
      %81 = sbr.rel (0) target = $region21
    $region20: #{tpu_custom_call.1} parent=1 // pred_region
      %82 = dma.done [#allocation3], 16
    $region21: #{tpu_custom_call.1} parent=1 // pred_fallthru
      _
    %83 = vsyncpa [#allocation3], 1

</llo_original>
